<compile_context>
chip_gen: v5e
topology: v5e:2x2
jax: 0.10.0
libtpu: 0.0.40
codegen_flags: <defaults>
</compile_context>

<pallas_src>
import functools
import math
import time

import jax
import jax.numpy as jnp
from jax.experimental import pallas as pl
from jax.experimental.pallas import tpu as pltpu


def _round_up(x: int, m: int) -> int:
    return ((x + m - 1) // m) * m


def _largest_aligned_divisor(total: int, cap: int, unit: int = 128) -> int:
    """Largest multiple of `unit` that exactly divides `total` and is <= cap."""
    q = total // unit
    best = 1
    d = 1
    while d * d <= q:
        if q % d == 0:
            for cand in (d, q // d):
                if cand * unit <= cap:
                    best = max(best, cand)
        d += 1
    return best * unit


def _choose_k_tiling(d_in: int, cap: int = 2048) -> tuple[int, int]:
    """Pad K only to 128/256 and pick tk as an exact divisor of Kp.

    Prefers fewer k grid steps, then less padding (no padding K up to tk)."""
    base = _round_up(d_in, 128)
    best = None
    for extra in (0, 128):
        kp = base + extra
        tk = _largest_aligned_divisor(kp, cap)
        key = (kp // tk, kp)  # (k-steps, padded K)
        if best is None or key < best[0]:
            best = (key, kp, tk)
    return best[1], best[2]


# --------------------------------------------------------------------------
# Kernels
# --------------------------------------------------------------------------
def _encode_kernel_single_k(x_ref, w_ref, b_ref, o_ref):
    # K fits one block: no accumulator scratch, no k axis, no pl.when.
    # Keeps the accumulation in the MXU result path and does a single
    # lane-dense bf16 store per output tile.
    o_ref[...] = jnp.tanh(
        jnp.dot(x_ref[...], w_ref[...], preferred_element_type=jnp.float32)
        + b_ref[...]
    ).astype(o_ref.dtype)


def _encode_kernel_multi_k(x_ref, w_ref, b_ref, o_ref, acc_ref):
    # x_ref: (tm, tk) bf16   w_ref: (tk, tn) bf16   b_ref: (1, tn) f32
    # o_ref: (tm, tn) bf16   acc_ref: (tm, tn) f32 VMEM (output-stationary)
    k = pl.program_id(2)
    part = jnp.dot(x_ref[...], w_ref[...], preferred_element_type=jnp.float32)

    @pl.when(k == 0)
    def _():
        acc_ref[...] = part          # write directly: no zero-init + add pass

    @pl.when(k > 0)
    def _():
        acc_ref[...] += part

    @pl.when(k == pl.num_programs(2) - 1)
    def _():
        # Epilogue: VPU bias add + EUP tanh, cast to bf16 only on store.
        o_ref[...] = jnp.tanh(acc_ref[...] + b_ref[...]).astype(o_ref.dtype)


# --------------------------------------------------------------------------
# pallas_call builder (operands already padded)
# --------------------------------------------------------------------------
def _pallas_encode(x2, w, b, *, tm, tn, tk):
    Mp, Kp = x2.shape
    Np = w.shape[1]

    if Kp == tk:
        # Single k-step: 2-D grid, no accumulator scratch.
        grid = (Mp // tm, Np // tn)
        kernel = _encode_kernel_single_k
        in_specs = [
            pl.BlockSpec((tm, tk), lambda i, j: (i, 0)),   # activations
            pl.BlockSpec((tk, tn), lambda i, j: (0, j)),   # weights (lane-dense N)
            pl.BlockSpec((1, tn), lambda i, j: (0, j)),    # bias
        ]
        out_specs = pl.BlockSpec((tm, tn), lambda i, j: (i, j))
        scratch = ()
        dims = ("parallel", "parallel")
    else:
        grid = (Mp // tm, Np // tn, Kp // tk)
        kernel = _encode_kernel_multi_k
        in_specs = [
            pl.BlockSpec((tm, tk), lambda i, j, k: (i, k)),
            pl.BlockSpec((tk, tn), lambda i, j, k: (k, j)),
            pl.BlockSpec((1, tn), lambda i, j, k: (0, j)),
        ]
        out_specs = pl.BlockSpec((tm, tn), lambda i, j, k: (i, j))
        scratch = (pltpu.VMEM((tm, tn), jnp.float32),)
        dims = ("parallel", "parallel", "arbitrary")

    return pl.pallas_call(
        kernel,
        out_shape=jax.ShapeDtypeStruct((Mp, Np), jnp.bfloat16),
        grid_spec=pltpu.PrefetchScalarGridSpec(
            num_scalar_prefetch=0,
            grid=grid,
            in_specs=in_specs,
            out_specs=out_specs,
            scratch_shapes=scratch,
        ),
        compiler_params=pltpu.CompilerParams(
            dimension_semantics=dims,
            # Big-tile configs here peak at ~10-14 MiB of double-buffered
            # tiles + f32 acc; 48 MiB is safe on v5e/v6e (128 MiB VMEM) and
            # within v7x's 64 MiB physical budget.
            vmem_limit_bytes=48 * 1024 * 1024,
        ),
    )(x2, w, b)


# --------------------------------------------------------------------------
# Jitted end-to-end encode: reshape + pad + cast + pallas_call + slice fuse
# into one dispatch.  W / b arrive already padded (done once at __init__).
# --------------------------------------------------------------------------
@functools.partial(jax.jit, static_argnames=("tm", "tn", "tk", "Mp", "d_out"))
def _encode(x, w_padded, b_padded, *, tm, tn, tk, Mp, d_out):
    B = x.shape[0]
    # Row-major NCHW flatten — identical element order to torch.Tensor.view(B, -1).
    x2 = x.reshape(B, -1).astype(jnp.bfloat16)
    d_in = x2.shape[1]
    Kp = w_padded.shape[0]
    pad_m = Mp - B
    pad_k = Kp - d_in
    if pad_m or pad_k:
        x2 = jnp.pad(x2, ((0, pad_m), (0, pad_k)))
    out = _pallas_encode(x2, w_padded, b_padded, tm=tm, tn=tn, tk=tk)
    return out[:B, :d_out]


def _choose_mn_tiles(B: int, Np: int) -> tuple[int, int, int]:
    """Pick (tm, Mp, tn) given the batch and padded output width."""
    # M: pad only to a bf16-friendly sublane multiple (16); tile caps at 512.
    Mp = _round_up(max(B, 16), 16)
    if Mp <= 512:
        tm = Mp
    else:
        tm = 512
        Mp = _round_up(Mp, tm)
    # N: tn >= 256 fills the 256-wide MXU on v6e/v7x; 512 when N is large.
    if Np % 512 == 0 and Np >= 1024:
        tn = 512
    elif Np % 256 == 0:
        tn = 256
    else:
        tn = 128
    # v7x megacore: if the (m, n) grid collapses to one block, one TensorCore
    # idles — split n to get at least 2 parallel programs.
    if Mp // tm == 1 and Np // tn == 1 and tn > 128 and Np % (tn // 2) == 0:
        tn //= 2
    return tm, Mp, tn


# --------------------------------------------------------------------------
# Concrete BaseTransmitter
# --------------------------------------------------------------------------
class PallasSemanticTransmitter:
    """Concrete Pallas realization of the abstract BaseTransmitter.

    forward(x) -> (semantic_representation, timings) with
    semantic = tanh(flatten(x) @ W + b).
    """

    def __init__(self, d_in: int, d_out: int, *, key, config: dict | None = None):
        self.config = dict(config) if config is not None else {}
        self.d_in = d_in
        self.d_out = d_out

        kw, kb = jax.random.split(key)
        scale = 1.0 / math.sqrt(d_in)
        w = jax.random.normal(kw, (d_in, d_out), dtype=jnp.float32) * scale
        b = jax.random.normal(kb, (1, d_out), dtype=jnp.float32) * 0.01

        # Unpadded copies (for reference / inspection).
        self.w = w.astype(jnp.bfloat16)
        self.b = b

        # K / N padding only depend on d_in / d_out -> pad & cast ONCE here so
        # no per-forward pass over W / b is needed.
        self.Kp, self.tk = _choose_k_tiling(d_in)
        self.Np = _round_up(d_out, 128)
        self.w_padded = jnp.pad(
            self.w, ((0, self.Kp - d_in), (0, self.Np - d_out))
        )
        self.b_padded = jnp.pad(b, ((0, 0), (0, self.Np - d_out)))

    def get_config(self) -> dict:
        return self.config

    def forward(self, input_data):
        B = input_data.shape[0]
        tm, Mp, tn = _choose_mn_tiles(B, self.Np)
        # NOTE: the first call for a given shape includes JIT compilation; the
        # demo below times a warmed second call for the reported timing.
        t0 = time.perf_counter()
        rep = _encode(
            input_data, self.w_padded, self.b_padded,
            tm=tm, tn=tn, tk=self.tk, Mp=Mp, d_out=self.d_out,
        )
        rep = jax.block_until_ready(rep)
        t1 = time.perf_counter()
        timings = {"encoding_time": t1 - t0}
        return rep, timings

    __call__ = forward


# --------------------------------------------------------------------------
if __name__ == "__main__":
    key = jax.random.PRNGKey(0)
    kx, kparams = jax.random.split(key)

    B, C, H, W = 2, 4, 16, 16
    D_IN, D_OUT = C * H * W, 256

    x = jax.random.normal(kx, (B, C, H, W), dtype=jnp.float32)
    tx = PallasSemanticTransmitter(
        D_IN, D_OUT, key=kparams, config={"d_in": D_IN, "d_out": D_OUT}
    )

    rep, timings = tx.forward(x)   # first call (includes compile)
    rep, timings = tx.forward(x)   # warmed steady-state call
    rep = jax.block_until_ready(rep)

    # Pure-JAX reference with the same bf16 operands / f32 accumulation.
    x2 = x.reshape(B, -1).astype(jnp.bfloat16).astype(jnp.float32)
    ref = jnp.tanh(x2 @ tx.w.astype(jnp.float32) + tx.b)

    assert rep.shape == (B, D_OUT)
    assert isinstance(timings, dict) and "encoding_time" in timings
    err = float(jnp.max(jnp.abs(rep.astype(jnp.float32) - ref)))
    assert err < 2e-2, f"max abs err {err}"

    print("KERNEL_OK")
</pallas_src>

<mosaic_0001>
module attributes {stable_mosaic.version = 11 : i64} {
  func.func @_encode_kernel_single_k(%arg0: i32, %arg1: i32, %arg2: memref<16x1024xbf16, #tpu.memory_space<vmem>>, %arg3: memref<1024x128xbf16, #tpu.memory_space<vmem>>, %arg4: memref<1x128xf32, #tpu.memory_space<vmem>>, %arg5: memref<16x128xbf16, #tpu.memory_space<vmem>>) attributes {dimension_semantics = [#tpu.dimension_semantics<parallel>, #tpu.dimension_semantics<parallel>], iteration_bounds = array<i64: 1, 2>, scalar_prefetch = 0 : i64, scratch_operands = 0 : i64, tpu.core_type = #tpu.core_type<tc>, window_params = [{transform_indices = @transform_0, window_bounds = array<i64: 16, 1024>}, {transform_indices = @transform_1, window_bounds = array<i64: 1024, 128>}, {transform_indices = @transform_2, window_bounds = array<i64: 1, 128>}, {transform_indices = @transform_3, window_bounds = array<i64: 16, 128>}]} {
    %c0 = arith.constant 0 : index
    %c0_0 = arith.constant 0 : index
    %0 = vector.load %arg2[%c0, %c0_0] : memref<16x1024xbf16, #tpu.memory_space<vmem>>, vector<16x1024xbf16>
    %c0_1 = arith.constant 0 : index
    %c0_2 = arith.constant 0 : index
    %1 = vector.load %arg3[%c0_1, %c0_2] : memref<1024x128xbf16, #tpu.memory_space<vmem>>, vector<1024x128xbf16>
    %cst = arith.constant dense<0.000000e+00> : vector<16x128xf32>
    %2 = tpu.matmul %0, %1, %cst {dimension_numbers = #tpu.dot_dimension_numbers<[1], [0], [0], [1], [0, 0, 1, 1], [], []>} : vector<16x1024xbf16>, vector<1024x128xbf16>, vector<16x128xf32> -> vector<16x128xf32>
    %c0_3 = arith.constant 0 : index
    %c0_4 = arith.constant 0 : index
    %3 = vector.load %arg4[%c0_3, %c0_4] : memref<1x128xf32, #tpu.memory_space<vmem>>, vector<1x128xf32>
    %4 = vector.broadcast %3 : vector<1x128xf32> to vector<16x128xf32>
    %5 = arith.addf %2, %4 : vector<16x128xf32>
    %6 = math.tanh %5 : vector<16x128xf32>
    %7 = arith.truncf %6 : vector<16x128xf32> to vector<16x128xbf16>
    %c0_5 = arith.constant 0 : index
    %c0_6 = arith.constant 0 : index
    %8 = vector.load %arg5[%c0_5, %c0_6] : memref<16x128xbf16, #tpu.memory_space<vmem>>, vector<16x128xbf16>
    tpu.vector_store %arg5[%c0_5, %c0_6], %7 {strides = array<i32>} : memref<16x128xbf16, #tpu.memory_space<vmem>>, vector<16x128xbf16>,
    return
  }
  func.func @transform_0(%arg0: i32, %arg1: i32) -> (i32, i32) {
    %c0_i32 = arith.constant 0 : i32
    %c0_i32_0 = arith.constant 0 : i32
    return %arg0, %c0_i32 : i32, i32
  }
  func.func @transform_1(%arg0: i32, %arg1: i32) -> (i32, i32) {
    %c0_i32 = arith.constant 0 : i32
    %c0_i32_0 = arith.constant 0 : i32
    return %c0_i32, %arg1 : i32, i32
  }
  func.func @transform_2(%arg0: i32, %arg1: i32) -> (i32, i32) {
    %c0_i32 = arith.constant 0 : i32
    %c0_i32_0 = arith.constant 0 : i32
    return %c0_i32, %arg1 : i32, i32
  }
  func.func @transform_3(%arg0: i32, %arg1: i32) -> (i32, i32) {
    %c0_i32 = arith.constant 0 : i32
    return %arg0, %arg1 : i32, i32
  }
}

</mosaic_0001>

<llo_original>
// kernel: _encode.1
$region0: #{_encode.1}
  #allocation0 [shape = 'u32[]', space=smem, size = 0x4, offset = 0x4, fixed_abs, tag = 'smem constant byte address 0x4 - core index']
  #allocation1 [shape = 'u32[72,128]{1,0:T(1,128)}', space=vmem, size = 0x9000, scoped, tag = 'internal scratch']
  %s0 = inlined_call_operand.vmem [shape: bf16[16,1024], index: 0, kind: input, shape index: {}]
  %s1 = inlined_call_operand.hbm [shape: bf16[1024,256], index: 1, kind: input, shape index: {}]
  %s2 = inlined_call_operand.vmem [shape: f32[1,256], index: 2, kind: input, shape index: {}]
  %s3 = inlined_call_operand.vmem [shape: bf16[16,256], index: 3, kind: output, shape index: {}]
  %s4 = sld [smem:[#allocation0]]
  $region86: #{_encode.1} parent=0
    _
  %s6 = ssub.s32 1, %s4
  %s7 = scalar_select 0, %s6, %s4
  $region1: #{_encode.1} parent=0
    #allocation2 [shape = 'u8[524288]{0}', space=vmem, size = 0x80000, scoped, tag = 'input window, operand 1']
    #allocation3 [shape = 's32[2]{0}', space=sflag, size = 0x8, scoped, tag = 'scoped memory for _encode.1']
    #allocation4 [shape = 'u8[8192]{0}', space=vmem, size = 0x2000, scoped, tag = 'output window, operand 0']
    %8 = vsyncpa [#allocation3], 0
    %s9 = scalar_lea.sflag [#allocation3], 1
    %10 = vsyncpa %s9, 0
    loop: start=0, step=1, limit=4
    $region2: #{_encode.1} parent=1 // loop_pre_header
      _
    $region3: #{_encode.1} parent=1 // loop_header
      %s12 = sphi 0, %s16
      %p13 = scmp.ge.s32.totalorder %s12, 4
      %s19 = sphi 0, %s31
      %s20 = sphi 0, %s27
      %s21 = sphi 0, %s19
      %s22 = sphi 0, %s20
      %s23 = sphi 0, %s21
      %s24 = sphi 0, %s22
      %s34 = sphi 0, %s36
      %s37 = sphi 0, %s34
      %s38 = sphi 0, %s37
      %s54 = sphi 0, %s38
      %s60 = sphi 0, %s62
      %s63 = sphi 0, %s60
      %s64 = sphi 0, %s63
      %s80 = sphi 0, %s64
      %s86 = sphi 0, %s88
      %s89 = sphi 0, %s86
      %s90 = sphi 0, %s89
      %s106 = sphi 0, %s90
      %s114 = sphi 0, %s116
      %s117 = sphi 0, %s114
      %s118 = sphi 0, %s117
      %s134 = sphi 0, %s118
    $region4: #{_encode.1} parent=1 // loop_header_branch
      %15 = sbr.rel (%p13) target = $region8
    $region5: #{_encode.1} parent=1 // loop_body
      %s17 = ssub.s32 %s12, 1
      %s18 = ssub.s32 %s12, 2
      %s25 = sadd.s32 1, %s20
      %p26 = scmp.ge.s32.totalorder %s25, 2
      %s27 = scalar_select %p26, 0, %s25
      %s28 = sadd.s32 1, %s19
      %s29 = scalar_select %p26, %s28, %s19
      %p30 = scmp.ge.s32.totalorder %s29, 1
      %s31 = scalar_select %p30, 0, %s29
      %s32 = ssub.s32 %s19, %s31
      %p33 = scmp.eq.s32.totalorder %s32, 0
      %s35 = sadd.s32 %s34, 1
      %s36 = scalar_select %p33, %s34, %s35
      %p39 = pneg %p33
      %p40 = scmp.eq.s32.totalorder %s12, 1
      %p41 = por %p39, %p40
      %p42 = scmp.ne.s32.totalorder %s34, %s37
      %p43 = scmp.eq.s32.totalorder %s12, 0
      %p44 = por %p42, %p43
      %p45 = scmp.ne.s32.totalorder %s34, %s37
      %p46 = scmp.eq.s32.totalorder %s17, 1
      %p47 = por %p45, %p46
      %p48 = scmp.ne.s32.totalorder %s37, %s38
      %p49 = scmp.eq.s32.totalorder %s17, 0
      %p50 = por %p48, %p49
      %p51 = scmp.ne.s32.totalorder %s37, %s38
      %p52 = scmp.eq.s32.totalorder %s18, 1
      %p53 = por %p51, %p52
      %p55 = scmp.ne.s32.totalorder %s38, %s54
      %p56 = scmp.eq.s32.totalorder %s18, 0
      %p57 = por %p55, %p56
      %s58 = ssub.s32 %s20, %s27
      %p59 = scmp.eq.s32.totalorder %s58, 0
      %s61 = sadd.s32 %s60, 1
      %s62 = scalar_select %p59, %s60, %s61
      %p65 = pneg %p59
      %p66 = scmp.eq.s32.totalorder %s12, 1
      %p67 = por %p65, %p66
      %p68 = scmp.ne.s32.totalorder %s60, %s63
      %p69 = scmp.eq.s32.totalorder %s12, 0
      %p70 = por %p68, %p69
      %p71 = scmp.ne.s32.totalorder %s60, %s63
      %p72 = scmp.eq.s32.totalorder %s17, 1
      %p73 = por %p71, %p72
      %p74 = scmp.ne.s32.totalorder %s63, %s64
      %p75 = scmp.eq.s32.totalorder %s17, 0
      %p76 = por %p74, %p75
      %p77 = scmp.ne.s32.totalorder %s63, %s64
      %p78 = scmp.eq.s32.totalorder %s18, 1
      %p79 = por %p77, %p78
      %p81 = scmp.ne.s32.totalorder %s64, %s80
      %p82 = scmp.eq.s32.totalorder %s18, 0
      %p83 = por %p81, %p82
      %s84 = ssub.s32 %s20, %s27
      %p85 = scmp.eq.s32.totalorder %s84, 0
      %s87 = sadd.s32 %s86, 1
      %s88 = scalar_select %p85, %s86, %s87
      %p91 = pneg %p85
      %p92 = scmp.eq.s32.totalorder %s12, 1
      %p93 = por %p91, %p92
      %p94 = scmp.ne.s32.totalorder %s86, %s89
      %p95 = scmp.eq.s32.totalorder %s12, 0
      %p96 = por %p94, %p95
      %p97 = scmp.ne.s32.totalorder %s86, %s89
      %p98 = scmp.eq.s32.totalorder %s17, 1
      %p99 = por %p97, %p98
      %p100 = scmp.ne.s32.totalorder %s89, %s90
      %p101 = scmp.eq.s32.totalorder %s17, 0
      %p102 = por %p100, %p101
      %p103 = scmp.ne.s32.totalorder %s89, %s90
      %p104 = scmp.eq.s32.totalorder %s18, 1
      %p105 = por %p103, %p104
      %p107 = scmp.ne.s32.totalorder %s90, %s106
      %p108 = scmp.eq.s32.totalorder %s18, 0
      %p109 = por %p107, %p108
      %s110 = ssub.s32 %s19, %s31
      %s111 = ssub.s32 %s20, %s27
      %s112 = sor.u32 %s110, %s111
      %p113 = scmp.eq.s32.totalorder %s112, 0
      %s115 = sadd.s32 %s114, 1
      %s116 = scalar_select %p113, %s114, %s115
      %p119 = pneg %p113
      %p120 = scmp.eq.s32.totalorder %s12, 1
      %p121 = por %p119, %p120
      %p122 = scmp.ne.s32.totalorder %s114, %s117
      %p123 = scmp.eq.s32.totalorder %s12, 0
      %p124 = por %p122, %p123
      %p125 = scmp.ne.s32.totalorder %s114, %s117
      %p126 = scmp.eq.s32.totalorder %s17, 1
      %p127 = por %p125, %p126
      %p128 = scmp.ne.s32.totalorder %s117, %s118
      %p129 = scmp.eq.s32.totalorder %s17, 0
      %p130 = por %p128, %p129
      %p131 = scmp.ne.s32.totalorder %s117, %s118
      %p132 = scmp.eq.s32.totalorder %s18, 1
      %p133 = por %p131, %p132
      %p135 = scmp.ne.s32.totalorder %s118, %s134
      %p136 = scmp.eq.s32.totalorder %s18, 0
      %p137 = por %p135, %p136
      %p138 = scmp.le.s32.totalorder 1, %s12
      %p139 = scmp.lt.s32.totalorder %s12, 3
      %p140 = pnand %p138, %p139
      %p141 = pneg %p140
      // Predicated region
      $region9: #{_encode.1} parent=5 // pred_check
        _
      $region10: #{_encode.1} parent=5 // pred_check_branch
        %143 = sbr.rel (%p140) target = $region12
      $region11: #{_encode.1} parent=5 // pred_region
        %s144 = ssub.s32 %s12, 1
        // Predicated region
        $region13: #{_encode.1} parent=11 // pred_check
          %p145 = pneg %p50
        $region14: #{_encode.1} parent=11 // pred_check_branch
          %147 = sbr.rel (%p145) target = $region16
        $region15: #{_encode.1} parent=11 // pred_region
          %s148 = smul.u32 2, %s21
          %p149 = scmp.lt.s32.totalorder %s148, 1
          %s150 = scalar_select %p149, %s148, 1
          %s151 = smul.addr %s150, 8
          %s152 = smul.addr %s151, 4
          %s153 = scalar_lea.vmem %s0, %s152
          %s154 = smul.u32 2, %s21
        $region16: #{_encode.1} parent=11 // pred_fallthru
          _
      $region12: #{_encode.1} parent=5 // pred_fallthru
        _
      %p155 = scmp.lt.s32.totalorder %s12, 2
      // Predicated region
      $region17: #{_encode.1} parent=5 // pred_check
        %p156 = pneg %p155
      $region18: #{_encode.1} parent=5 // pred_check_branch
        %158 = sbr.rel (%p156) target = $region20
      $region19: #{_encode.1} parent=5 // pred_region
        // Predicated region
        $region21: #{_encode.1} parent=19 // pred_check
          %p159 = pneg %p70
        $region22: #{_encode.1} parent=19 // pred_check_branch
          %161 = sbr.rel (%p159) target = $region24
        $region23: #{_encode.1} parent=19 // pred_region
          %s162 = sand.u32 %s60, 1
          %s163 = scalar_lea.sflag [#allocation3], %s162
          %s164 = sand.u32 %s60, 1
          %s165 = smul.addr %s164, 512
          %s166 = scalar_lea.vmem [#allocation2], %s165
          %168 = vsyncadd %s163, 0
          %s169 = smul.addr %s20, 4
          %s170 = scalar_lea.hbm %s1, %s169
          %s171 = sshll.u32 %s170, 4
          %s172 = int_to_ptr.hbm [resolvable:$true] %s171
          %s173 = sshll.u32 %s166, 4
          %s174 = int_to_ptr.vmem [resolvable:$true] %s173
          %179 = dma.hbm_to_vmem [thread:$0]  %s172, 8192, %s174, %s163, 128, 64, 4
        $region24: #{_encode.1} parent=19 // pred_fallthru
          _
        // Predicated region
        $region25: #{_encode.1} parent=19 // pred_check
          %p180 = pneg %p96
        $region26: #{_encode.1} parent=19 // pred_check_branch
          %182 = sbr.rel (%p180) target = $region28
        $region27: #{_encode.1} parent=19 // pred_region
          %p183 = scmp.lt.s32.totalorder %s20, 1
          %s184 = scalar_select %p183, %s20, 1
          %s185 = scalar_lea.vmem %s2, %s184
        $region28: #{_encode.1} parent=19 // pred_fallthru
          _
      $region20: #{_encode.1} parent=5 // pred_fallthru
        _
      %p186 = scmp.le.s32.totalorder 1, %s12
      %p187 = scmp.lt.s32.totalorder %s12, 3
      %p188 = pnand %p186, %p187
      %p189 = pneg %p188
      // Predicated region
      $region29: #{_encode.1} parent=5 // pred_check
        _
      $region30: #{_encode.1} parent=5 // pred_check_branch
        %191 = sbr.rel (%p188) target = $region32
      $region31: #{_encode.1} parent=5 // pred_region
        %s192 = ssub.s32 %s12, 1
        %s193 = sand.u32 %s63, 1
        %s194 = scalar_lea.sflag [#allocation3], %s193
        %s195 = sand.u32 %s63, 1
        %s196 = smul.addr %s195, 512
        %s197 = scalar_lea.vmem [#allocation2], %s196
        // Predicated region
        $region33: #{_encode.1} parent=31 // pred_check
          %p198 = pneg %p76
        $region34: #{_encode.1} parent=31 // pred_check_branch
          %200 = sbr.rel (%p198) target = $region36
        $region35: #{_encode.1} parent=31 // pred_region
          %202 = dma.done %s194, 8192
        $region36: #{_encode.1} parent=31 // pred_fallthru
          _
        %s203 = smul.u32 2, %s21
        %p204 = scmp.lt.s32.totalorder %s203, 1
        %s205 = scalar_select %p204, %s203, 1
        %s206 = smul.addr %s205, 8
        %s207 = smul.addr %s206, 4
        %s208 = scalar_lea.vmem %s0, %s207
        %p209 = pneg %p50
        %p210 = pneg %p47
        %s211 = sand.u32 %s63, 1
        %s212 = scalar_lea.sflag [#allocation3], %s211
        %s213 = sand.u32 %s63, 1
        %s214 = smul.addr %s213, 512
        %s215 = scalar_lea.vmem [#allocation2], %s214
        %p216 = pneg %p76
        %p217 = pneg %p73
        %p218 = scmp.lt.s32.totalorder %s22, 1
        %s219 = scalar_select %p218, %s22, 1
        %s220 = scalar_lea.vmem %s2, %s219
        %p221 = pneg %p102
        %p222 = pneg %p99
        %p223 = pneg %p130
        %p224 = pneg %p127
        %s225 = sand.u32 %s117, 1
        %s226 = sand.u32 %s117, 1
        %s227 = smul.addr %s226, 8
        %s228 = scalar_lea.vmem [#allocation4], %s227
        %s229 = smul.u32 2, %s21
        %p230 = scmp.lt.s32.totalorder %s229, 1
        %s231 = scalar_select %p230, %s229, 1
        %s232 = smul.addr %s231, 8
        %s233 = smul.addr %s232, 4
        %s234 = scalar_lea.vmem %s0, %s233
        %s235 = smul.u32 2, %s21
        %p236 = scmp.lt.s32.totalorder %s22, 1
        %s237 = scalar_select %p236, %s22, 1
        %s238 = scalar_lea.vmem %s2, %s237
        %s239 = smul.u32 2, %s21
        %v240 = vld [vmem:[%s234] sm:$0xff]
        %v241 = vld [vmem:[%s234 + $0x8] sm:$0xff]
        %v242 = vld [vmem:[%s234 + $0x10] sm:$0xff]
        %v243 = vld [vmem:[%s234 + $0x18] sm:$0xff]
        %v244 = vld [vmem:[%s234 + $0x20] sm:$0xff]
        %v245 = vld [vmem:[%s234 + $0x28] sm:$0xff]
        %v246 = vld [vmem:[%s234 + $0x30] sm:$0xff]
        %v247 = vld [vmem:[%s234 + $0x38] sm:$0xff]
        %v248 = vld [vmem:[%s197] sm:$0xf]
        %v249 = vld [vmem:[%s197 + $0x4] sm:$0xf]
        %v250 = vld [vmem:[%s197 + $0x8] sm:$0xf]
        %v251 = vld [vmem:[%s197 + $0xc] sm:$0xf]
        %v252 = vld [vmem:[%s197 + $0x10] sm:$0xf]
        %v253 = vld [vmem:[%s197 + $0x14] sm:$0xf]
        %v254 = vld [vmem:[%s197 + $0x18] sm:$0xf]
        %v255 = vld [vmem:[%s197 + $0x1c] sm:$0xf]
        %v256 = vld [vmem:[%s197 + $0x20] sm:$0xf]
        %v257 = vld [vmem:[%s197 + $0x24] sm:$0xf]
        %v258 = vld [vmem:[%s197 + $0x28] sm:$0xf]
        %v259 = vld [vmem:[%s197 + $0x2c] sm:$0xf]
        %v260 = vld [vmem:[%s197 + $0x30] sm:$0xf]
        %v261 = vld [vmem:[%s197 + $0x34] sm:$0xf]
        %v262 = vld [vmem:[%s197 + $0x38] sm:$0xf]
        %v263 = vld [vmem:[%s197 + $0x3c] sm:$0xf]
        %v264 = vld [vmem:[%s197 + $0x40] sm:$0xf]
        %v265 = vld [vmem:[%s197 + $0x44] sm:$0xf]
        %v266 = vld [vmem:[%s197 + $0x48] sm:$0xf]
        %v267 = vld [vmem:[%s197 + $0x4c] sm:$0xf]
        %v268 = vld [vmem:[%s197 + $0x50] sm:$0xf]
        %v269 = vld [vmem:[%s197 + $0x54] sm:$0xf]
        %v270 = vld [vmem:[%s197 + $0x58] sm:$0xf]
        %v271 = vld [vmem:[%s197 + $0x5c] sm:$0xf]
        %v272 = vld [vmem:[%s197 + $0x60] sm:$0xf]
        %v273 = vld [vmem:[%s197 + $0x64] sm:$0xf]
        %v274 = vld [vmem:[%s197 + $0x68] sm:$0xf]
        %v275 = vld [vmem:[%s197 + $0x6c] sm:$0xf]
        %v276 = vld [vmem:[%s197 + $0x70] sm:$0xf]
        %v277 = vld [vmem:[%s197 + $0x74] sm:$0xf]
        %v278 = vld [vmem:[%s197 + $0x78] sm:$0xf]
        %v279 = vld [vmem:[%s197 + $0x7c] sm:$0xf]
        %v280 = vld [vmem:[%s197 + $0x80] sm:$0xf]
        %v281 = vld [vmem:[%s197 + $0x84] sm:$0xf]
        %v282 = vld [vmem:[%s197 + $0x88] sm:$0xf]
        %v283 = vld [vmem:[%s197 + $0x8c] sm:$0xf]
        %v284 = vld [vmem:[%s197 + $0x90] sm:$0xf]
        %v285 = vld [vmem:[%s197 + $0x94] sm:$0xf]
        %v286 = vld [vmem:[%s197 + $0x98] sm:$0xf]
        %v287 = vld [vmem:[%s197 + $0x9c] sm:$0xf]
        %v288 = vld [vmem:[%s197 + $0xa0] sm:$0xf]
        %v289 = vld [vmem:[%s197 + $0xa4] sm:$0xf]
        %v290 = vld [vmem:[%s197 + $0xa8] sm:$0xf]
        %v291 = vld [vmem:[%s197 + $0xac] sm:$0xf]
        %v292 = vld [vmem:[%s197 + $0xb0] sm:$0xf]
        %v293 = vld [vmem:[%s197 + $0xb4] sm:$0xf]
        %v294 = vld [vmem:[%s197 + $0xb8] sm:$0xf]
        %v295 = vld [vmem:[%s197 + $0xbc] sm:$0xf]
        %v296 = vld [vmem:[%s197 + $0xc0] sm:$0xf]
        %v297 = vld [vmem:[%s197 + $0xc4] sm:$0xf]
        %v298 = vld [vmem:[%s197 + $0xc8] sm:$0xf]
        %v299 = vld [vmem:[%s197 + $0xcc] sm:$0xf]
        %v300 = vld [vmem:[%s197 + $0xd0] sm:$0xf]
        %v301 = vld [vmem:[%s197 + $0xd4] sm:$0xf]
        %v302 = vld [vmem:[%s197 + $0xd8] sm:$0xf]
        %v303 = vld [vmem:[%s197 + $0xdc] sm:$0xf]
        %v304 = vld [vmem:[%s197 + $0xe0] sm:$0xf]
        %v305 = vld [vmem:[%s197 + $0xe4] sm:$0xf]
        %v306 = vld [vmem:[%s197 + $0xe8] sm:$0xf]
        %v307 = vld [vmem:[%s197 + $0xec] sm:$0xf]
        %v308 = vld [vmem:[%s197 + $0xf0] sm:$0xf]
        %v309 = vld [vmem:[%s197 + $0xf4] sm:$0xf]
        %v310 = vld [vmem:[%s197 + $0xf8] sm:$0xf]
        %v311 = vld [vmem:[%s197 + $0xfc] sm:$0xf]
        %v312 = vld [vmem:[%s197 + $0x100] sm:$0xf]
        %v313 = vld [vmem:[%s197 + $0x104] sm:$0xf]
        %v314 = vld [vmem:[%s197 + $0x108] sm:$0xf]
        %v315 = vld [vmem:[%s197 + $0x10c] sm:$0xf]
        %v316 = vld [vmem:[%s197 + $0x110] sm:$0xf]
        %v317 = vld [vmem:[%s197 + $0x114] sm:$0xf]
        %v318 = vld [vmem:[%s197 + $0x118] sm:$0xf]
        %v319 = vld [vmem:[%s197 + $0x11c] sm:$0xf]
        %v320 = vld [vmem:[%s197 + $0x120] sm:$0xf]
        %v321 = vld [vmem:[%s197 + $0x124] sm:$0xf]
        %v322 = vld [vmem:[%s197 + $0x128] sm:$0xf]
        %v323 = vld [vmem:[%s197 + $0x12c] sm:$0xf]
        %v324 = vld [vmem:[%s197 + $0x130] sm:$0xf]
        %v325 = vld [vmem:[%s197 + $0x134] sm:$0xf]
        %v326 = vld [vmem:[%s197 + $0x138] sm:$0xf]
        %v327 = vld [vmem:[%s197 + $0x13c] sm:$0xf]
        %v328 = vld [vmem:[%s197 + $0x140] sm:$0xf]
        %v329 = vld [vmem:[%s197 + $0x144] sm:$0xf]
        %v330 = vld [vmem:[%s197 + $0x148] sm:$0xf]
        %v331 = vld [vmem:[%s197 + $0x14c] sm:$0xf]
        %v332 = vld [vmem:[%s197 + $0x150] sm:$0xf]
        %v333 = vld [vmem:[%s197 + $0x154] sm:$0xf]
        %v334 = vld [vmem:[%s197 + $0x158] sm:$0xf]
        %v335 = vld [vmem:[%s197 + $0x15c] sm:$0xf]
        %v336 = vld [vmem:[%s197 + $0x160] sm:$0xf]
        %v337 = vld [vmem:[%s197 + $0x164] sm:$0xf]
        %v338 = vld [vmem:[%s197 + $0x168] sm:$0xf]
        %v339 = vld [vmem:[%s197 + $0x16c] sm:$0xf]
        %v340 = vld [vmem:[%s197 + $0x170] sm:$0xf]
        %v341 = vld [vmem:[%s197 + $0x174] sm:$0xf]
        %v342 = vld [vmem:[%s197 + $0x178] sm:$0xf]
        %v343 = vld [vmem:[%s197 + $0x17c] sm:$0xf]
        %v344 = vld [vmem:[%s197 + $0x180] sm:$0xf]
        %v345 = vld [vmem:[%s197 + $0x184] sm:$0xf]
        %v346 = vld [vmem:[%s197 + $0x188] sm:$0xf]
        %v347 = vld [vmem:[%s197 + $0x18c] sm:$0xf]
        %v348 = vld [vmem:[%s197 + $0x190] sm:$0xf]
        %v349 = vld [vmem:[%s197 + $0x194] sm:$0xf]
        %v350 = vld [vmem:[%s197 + $0x198] sm:$0xf]
        %v351 = vld [vmem:[%s197 + $0x19c] sm:$0xf]
        %v352 = vld [vmem:[%s197 + $0x1a0] sm:$0xf]
        %v353 = vld [vmem:[%s197 + $0x1a4] sm:$0xf]
        %v354 = vld [vmem:[%s197 + $0x1a8] sm:$0xf]
        %v355 = vld [vmem:[%s197 + $0x1ac] sm:$0xf]
        %v356 = vld [vmem:[%s197 + $0x1b0] sm:$0xf]
        %v357 = vld [vmem:[%s197 + $0x1b4] sm:$0xf]
        %v358 = vld [vmem:[%s197 + $0x1b8] sm:$0xf]
        %v359 = vld [vmem:[%s197 + $0x1bc] sm:$0xf]
        %v360 = vld [vmem:[%s197 + $0x1c0] sm:$0xf]
        %v361 = vld [vmem:[%s197 + $0x1c4] sm:$0xf]
        %v362 = vld [vmem:[%s197 + $0x1c8] sm:$0xf]
        %v363 = vld [vmem:[%s197 + $0x1cc] sm:$0xf]
        %v364 = vld [vmem:[%s197 + $0x1d0] sm:$0xf]
        %v365 = vld [vmem:[%s197 + $0x1d4] sm:$0xf]
        %v366 = vld [vmem:[%s197 + $0x1d8] sm:$0xf]
        %v367 = vld [vmem:[%s197 + $0x1dc] sm:$0xf]
        %v368 = vld [vmem:[%s197 + $0x1e0] sm:$0xf]
        %v369 = vld [vmem:[%s197 + $0x1e4] sm:$0xf]
        %v370 = vld [vmem:[%s197 + $0x1e8] sm:$0xf]
        %v371 = vld [vmem:[%s197 + $0x1ec] sm:$0xf]
        %v372 = vld [vmem:[%s197 + $0x1f0] sm:$0xf]
        %v373 = vld [vmem:[%s197 + $0x1f4] sm:$0xf]
        %v374 = vld [vmem:[%s197 + $0x1f8] sm:$0xf]
        %v375 = vld [vmem:[%s197 + $0x1fc] sm:$0xf]
        %v376 = vld [vmem:[%s238] sm:$0x1]
        %v378 = vperm.slane %v376, 0
        %v388 = vunpack.c.l.b16 %v240
        %v389 = vunpack.c.h.b16 %v240
        %v390 = vunpack.c.l.b16 %v241
        %v391 = vunpack.c.h.b16 %v241
        %v392 = vunpack.c.l.b16 %v242
        %v393 = vunpack.c.h.b16 %v242
        %v394 = vunpack.c.l.b16 %v243
        %v395 = vunpack.c.h.b16 %v243
        %v396 = vunpack.c.l.b16 %v244
        %v397 = vunpack.c.h.b16 %v244
        %v398 = vunpack.c.l.b16 %v245
        %v399 = vunpack.c.h.b16 %v245
        %v400 = vunpack.c.l.b16 %v246
        %v401 = vunpack.c.h.b16 %v246
        %v402 = vunpack.c.l.b16 %v247
        %v403 = vunpack.c.h.b16 %v247
        %v404 = vpack.c.b16 %v396, %v388
        %v405 = vpack.c.b16 %v397, %v389
        %v406 = vpack.c.b16 %v398, %v390
        %v407 = vpack.c.b16 %v399, %v391
        %v408 = vpack.c.b16 %v400, %v392
        %v409 = vpack.c.b16 %v401, %v393
        %v410 = vpack.c.b16 %v402, %v394
        %v411 = vpack.c.b16 %v403, %v395
        %v548 = vunpack.c.l.b16 %v248
        %v549 = vunpack.c.l.b16 %v249
        %v550 = vunpack.c.l.b16 %v250
        %v551 = vunpack.c.l.b16 %v251
        %v552 = vunpack.c.l.b16 %v252
        %v553 = vunpack.c.l.b16 %v253
        %v554 = vunpack.c.l.b16 %v254
        %v555 = vunpack.c.l.b16 %v255
        %v556 = vunpack.c.l.b16 %v256
        %v557 = vunpack.c.l.b16 %v257
        %v558 = vunpack.c.l.b16 %v258
        %v559 = vunpack.c.l.b16 %v259
        %v560 = vunpack.c.l.b16 %v260
        %v561 = vunpack.c.l.b16 %v261
        %v562 = vunpack.c.l.b16 %v262
        %v563 = vunpack.c.l.b16 %v263
        %v564 = vunpack.c.l.b16 %v264
        %v565 = vunpack.c.l.b16 %v265
        %v566 = vunpack.c.l.b16 %v266
        %v567 = vunpack.c.l.b16 %v267
        %v568 = vunpack.c.l.b16 %v268
        %v569 = vunpack.c.l.b16 %v269
        %v570 = vunpack.c.l.b16 %v270
        %v571 = vunpack.c.l.b16 %v271
        %v572 = vunpack.c.l.b16 %v272
        %v573 = vunpack.c.l.b16 %v273
        %v574 = vunpack.c.l.b16 %v274
        %v575 = vunpack.c.l.b16 %v275
        %v576 = vunpack.c.l.b16 %v276
        %v577 = vunpack.c.l.b16 %v277
        %v578 = vunpack.c.l.b16 %v278
        %v579 = vunpack.c.l.b16 %v279
        %v580 = vunpack.c.l.b16 %v280
        %v581 = vunpack.c.l.b16 %v281
        %v582 = vunpack.c.l.b16 %v282
        %v583 = vunpack.c.l.b16 %v283
        %v584 = vunpack.c.l.b16 %v284
        %v585 = vunpack.c.l.b16 %v285
        %v586 = vunpack.c.l.b16 %v286
        %v587 = vunpack.c.l.b16 %v287
        %v588 = vunpack.c.l.b16 %v288
        %v589 = vunpack.c.l.b16 %v289
        %v590 = vunpack.c.l.b16 %v290
        %v591 = vunpack.c.l.b16 %v291
        %v592 = vunpack.c.l.b16 %v292
        %v593 = vunpack.c.l.b16 %v293
        %v594 = vunpack.c.l.b16 %v294
        %v595 = vunpack.c.l.b16 %v295
        %v596 = vunpack.c.l.b16 %v296
        %v597 = vunpack.c.l.b16 %v297
        %v598 = vunpack.c.l.b16 %v298
        %v599 = vunpack.c.l.b16 %v299
        %v600 = vunpack.c.l.b16 %v300
        %v601 = vunpack.c.l.b16 %v301
        %v602 = vunpack.c.l.b16 %v302
        %v603 = vunpack.c.l.b16 %v303
        %v604 = vunpack.c.l.b16 %v304
        %v605 = vunpack.c.l.b16 %v305
        %v606 = vunpack.c.l.b16 %v306
        %v607 = vunpack.c.l.b16 %v307
        %v608 = vunpack.c.l.b16 %v308
        %v609 = vunpack.c.l.b16 %v309
        %v610 = vunpack.c.l.b16 %v310
        %v611 = vunpack.c.l.b16 %v311
        %v612 = vunpack.c.l.b16 %v312
        %v613 = vunpack.c.l.b16 %v313
        %v614 = vunpack.c.l.b16 %v314
        %v615 = vunpack.c.l.b16 %v315
        %v616 = vunpack.c.l.b16 %v316
        %v617 = vunpack.c.l.b16 %v317
        %v618 = vunpack.c.l.b16 %v318
        %v619 = vunpack.c.l.b16 %v319
        %v620 = vunpack.c.l.b16 %v320
        %v621 = vunpack.c.l.b16 %v321
        %v622 = vunpack.c.l.b16 %v322
        %v623 = vunpack.c.l.b16 %v323
        %v624 = vunpack.c.l.b16 %v324
        %v625 = vunpack.c.l.b16 %v325
        %v626 = vunpack.c.l.b16 %v326
        %v627 = vunpack.c.l.b16 %v327
        %v628 = vunpack.c.l.b16 %v328
        %v629 = vunpack.c.l.b16 %v329
        %v630 = vunpack.c.l.b16 %v330
        %v631 = vunpack.c.l.b16 %v331
        %v632 = vunpack.c.l.b16 %v332
        %v633 = vunpack.c.l.b16 %v333
        %v634 = vunpack.c.l.b16 %v334
        %v635 = vunpack.c.l.b16 %v335
        %v636 = vunpack.c.l.b16 %v336
        %v637 = vunpack.c.l.b16 %v337
        %v638 = vunpack.c.l.b16 %v338
        %v639 = vunpack.c.l.b16 %v339
        %v640 = vunpack.c.l.b16 %v340
        %v641 = vunpack.c.l.b16 %v341
        %v642 = vunpack.c.l.b16 %v342
        %v643 = vunpack.c.l.b16 %v343
        %v644 = vunpack.c.l.b16 %v344
        %v645 = vunpack.c.l.b16 %v345
        %v646 = vunpack.c.l.b16 %v346
        %v647 = vunpack.c.l.b16 %v347
        %v648 = vunpack.c.l.b16 %v348
        %v649 = vunpack.c.l.b16 %v349
        %v650 = vunpack.c.l.b16 %v350
        %v651 = vunpack.c.l.b16 %v351
        %v652 = vunpack.c.l.b16 %v352
        %v653 = vunpack.c.l.b16 %v353
        %v654 = vunpack.c.l.b16 %v354
        %v655 = vunpack.c.l.b16 %v355
        %v656 = vunpack.c.l.b16 %v356
        %v657 = vunpack.c.l.b16 %v357
        %v658 = vunpack.c.l.b16 %v358
        %v659 = vunpack.c.l.b16 %v359
        %v660 = vunpack.c.l.b16 %v360
        %v661 = vunpack.c.l.b16 %v361
        %v662 = vunpack.c.l.b16 %v362
        %v663 = vunpack.c.l.b16 %v363
        %v664 = vunpack.c.l.b16 %v364
        %v665 = vunpack.c.l.b16 %v365
        %v666 = vunpack.c.l.b16 %v366
        %v667 = vunpack.c.l.b16 %v367
        %v668 = vunpack.c.l.b16 %v368
        %v669 = vunpack.c.l.b16 %v369
        %v670 = vunpack.c.l.b16 %v370
        %v671 = vunpack.c.l.b16 %v371
        %v672 = vunpack.c.l.b16 %v372
        %v673 = vunpack.c.l.b16 %v373
        %v674 = vunpack.c.l.b16 %v374
        %v675 = vunpack.c.l.b16 %v375
        %v676 = vpack.c.b16 %v549, %v548
        %v677 = vpack.c.b16 %v551, %v550
        %v678 = vpack.c.b16 %v553, %v552
        %v679 = vpack.c.b16 %v555, %v554
        %v680 = vpack.c.b16 %v557, %v556
        %v681 = vpack.c.b16 %v559, %v558
        %v682 = vpack.c.b16 %v561, %v560
        %v683 = vpack.c.b16 %v563, %v562
        %v684 = vpack.c.b16 %v565, %v564
        %v685 = vpack.c.b16 %v567, %v566
        %v686 = vpack.c.b16 %v569, %v568
        %v687 = vpack.c.b16 %v571, %v570
        %v688 = vpack.c.b16 %v573, %v572
        %v689 = vpack.c.b16 %v575, %v574
        %v690 = vpack.c.b16 %v577, %v576
        %v691 = vpack.c.b16 %v579, %v578
        %v692 = vpack.c.b16 %v581, %v580
        %v693 = vpack.c.b16 %v583, %v582
        %v694 = vpack.c.b16 %v585, %v584
        %v695 = vpack.c.b16 %v587, %v586
        %v696 = vpack.c.b16 %v589, %v588
        %v697 = vpack.c.b16 %v591, %v590
        %v698 = vpack.c.b16 %v593, %v592
        %v699 = vpack.c.b16 %v595, %v594
        %v700 = vpack.c.b16 %v597, %v596
        %v701 = vpack.c.b16 %v599, %v598
        %v702 = vpack.c.b16 %v601, %v600
        %v703 = vpack.c.b16 %v603, %v602
        %v704 = vpack.c.b16 %v605, %v604
        %v705 = vpack.c.b16 %v607, %v606
        %v706 = vpack.c.b16 %v609, %v608
        %v707 = vpack.c.b16 %v611, %v610
        %v708 = vpack.c.b16 %v613, %v612
        %v709 = vpack.c.b16 %v615, %v614
        %v710 = vpack.c.b16 %v617, %v616
        %v711 = vpack.c.b16 %v619, %v618
        %v712 = vpack.c.b16 %v621, %v620
        %v713 = vpack.c.b16 %v623, %v622
        %v714 = vpack.c.b16 %v625, %v624
        %v715 = vpack.c.b16 %v627, %v626
        %v716 = vpack.c.b16 %v629, %v628
        %v717 = vpack.c.b16 %v631, %v630
        %v718 = vpack.c.b16 %v633, %v632
        %v719 = vpack.c.b16 %v635, %v634
        %v720 = vpack.c.b16 %v637, %v636
        %v721 = vpack.c.b16 %v639, %v638
        %v722 = vpack.c.b16 %v641, %v640
        %v723 = vpack.c.b16 %v643, %v642
        %v724 = vpack.c.b16 %v645, %v644
        %v725 = vpack.c.b16 %v647, %v646
        %v726 = vpack.c.b16 %v649, %v648
        %v727 = vpack.c.b16 %v651, %v650
        %v728 = vpack.c.b16 %v653, %v652
        %v729 = vpack.c.b16 %v655, %v654
        %v730 = vpack.c.b16 %v657, %v656
        %v731 = vpack.c.b16 %v659, %v658
        %v732 = vpack.c.b16 %v661, %v660
        %v733 = vpack.c.b16 %v663, %v662
        %v734 = vpack.c.b16 %v665, %v664
        %v735 = vpack.c.b16 %v667, %v666
        %v736 = vpack.c.b16 %v669, %v668
        %v737 = vpack.c.b16 %v671, %v670
        %v738 = vpack.c.b16 %v673, %v672
        %v739 = vpack.c.b16 %v675, %v674
        %804 = vmatpush.bf16.msra.mxu0 %v683
        %805 = vmatpush.bf16.msra.mxu0 %v682
        %806 = vmatpush.bf16.msra.mxu0 %v681
        %807 = vmatpush.bf16.msra.mxu0 %v680
        %808 = vmatpush.bf16.msra.mxu0 %v679
        %809 = vmatpush.bf16.msra.mxu0 %v678
        %810 = vmatpush.bf16.msra.mxu0 %v677
        %811 = vmatpush.bf16.msra.mxu0 %v676
        %812 = vmatmul.bf16.gmra.mxu0 %v404
        %v813 = vpop.f32.mrf.mxu0
        %v814 = vadd.f32 %v378, %v813
        %v815 = vpop.f32.mrf.mxu0
        %v816 = vadd.f32 %v378, %v815
        %817 = vdwg.mxu0
        %818 = vmatpush.bf16.msra.mxu0 %v691
        %819 = vmatpush.bf16.msra.mxu0 %v690
        %820 = vmatpush.bf16.msra.mxu0 %v689
        %821 = vmatpush.bf16.msra.mxu0 %v688
        %822 = vmatpush.bf16.msra.mxu0 %v687
        %823 = vmatpush.bf16.msra.mxu0 %v686
        %824 = vmatpush.bf16.msra.mxu0 %v685
        %825 = vmatpush.bf16.msra.mxu0 %v684
        %826 = vmatmul.bf16.gmra.mxu0 %v405
        %v827 = vpop.f32.mrf.mxu0
        %v828 = vadd.f32 %v814, %v827
        %v829 = vpop.f32.mrf.mxu0
        %v830 = vadd.f32 %v816, %v829
        %831 = vdwg.mxu0
        %832 = vmatpush.bf16.msra.mxu0 %v699
        %833 = vmatpush.bf16.msra.mxu0 %v698
        %834 = vmatpush.bf16.msra.mxu0 %v697
        %835 = vmatpush.bf16.msra.mxu0 %v696
        %836 = vmatpush.bf16.msra.mxu0 %v695
        %837 = vmatpush.bf16.msra.mxu0 %v694
        %838 = vmatpush.bf16.msra.mxu0 %v693
        %839 = vmatpush.bf16.msra.mxu0 %v692
        %840 = vmatmul.bf16.gmra.mxu0 %v406
        %v841 = vpop.f32.mrf.mxu0
        %v842 = vadd.f32 %v828, %v841
        %v843 = vpop.f32.mrf.mxu0
        %v844 = vadd.f32 %v830, %v843
        %845 = vdwg.mxu0
        %846 = vmatpush.bf16.msra.mxu0 %v707
        %847 = vmatpush.bf16.msra.mxu0 %v706
        %848 = vmatpush.bf16.msra.mxu0 %v705
        %849 = vmatpush.bf16.msra.mxu0 %v704
        %850 = vmatpush.bf16.msra.mxu0 %v703
        %851 = vmatpush.bf16.msra.mxu0 %v702
        %852 = vmatpush.bf16.msra.mxu0 %v701
        %853 = vmatpush.bf16.msra.mxu0 %v700
        %854 = vmatmul.bf16.gmra.mxu0 %v407
        %v855 = vpop.f32.mrf.mxu0
        %v856 = vadd.f32 %v842, %v855
        %v857 = vpop.f32.mrf.mxu0
        %v858 = vadd.f32 %v844, %v857
        %859 = vdwg.mxu0
        %860 = vmatpush.bf16.msra.mxu0 %v715
        %861 = vmatpush.bf16.msra.mxu0 %v714
        %862 = vmatpush.bf16.msra.mxu0 %v713
        %863 = vmatpush.bf16.msra.mxu0 %v712
        %864 = vmatpush.bf16.msra.mxu0 %v711
        %865 = vmatpush.bf16.msra.mxu0 %v710
        %866 = vmatpush.bf16.msra.mxu0 %v709
        %867 = vmatpush.bf16.msra.mxu0 %v708
        %868 = vmatmul.bf16.gmra.mxu0 %v408
        %v869 = vpop.f32.mrf.mxu0
        %v870 = vadd.f32 %v856, %v869
        %v871 = vpop.f32.mrf.mxu0
        %v872 = vadd.f32 %v858, %v871
        %873 = vdwg.mxu0
        %874 = vmatpush.bf16.msra.mxu0 %v723
        %875 = vmatpush.bf16.msra.mxu0 %v722
        %876 = vmatpush.bf16.msra.mxu0 %v721
        %877 = vmatpush.bf16.msra.mxu0 %v720
        %878 = vmatpush.bf16.msra.mxu0 %v719
        %879 = vmatpush.bf16.msra.mxu0 %v718
        %880 = vmatpush.bf16.msra.mxu0 %v717
        %881 = vmatpush.bf16.msra.mxu0 %v716
        %882 = vmatmul.bf16.gmra.mxu0 %v409
        %v883 = vpop.f32.mrf.mxu0
        %v884 = vadd.f32 %v870, %v883
        %v885 = vpop.f32.mrf.mxu0
        %v886 = vadd.f32 %v872, %v885
        %887 = vdwg.mxu0
        %888 = vmatpush.bf16.msra.mxu0 %v731
        %889 = vmatpush.bf16.msra.mxu0 %v730
        %890 = vmatpush.bf16.msra.mxu0 %v729
        %891 = vmatpush.bf16.msra.mxu0 %v728
        %892 = vmatpush.bf16.msra.mxu0 %v727
        %893 = vmatpush.bf16.msra.mxu0 %v726
        %894 = vmatpush.bf16.msra.mxu0 %v725
        %895 = vmatpush.bf16.msra.mxu0 %v724
        %896 = vmatmul.bf16.gmra.mxu0 %v410
        %v897 = vpop.f32.mrf.mxu0
        %v898 = vadd.f32 %v884, %v897
        %v899 = vpop.f32.mrf.mxu0
        %v900 = vadd.f32 %v886, %v899
        %901 = vdwg.mxu0
        %902 = vmatpush.bf16.msra.mxu0 %v739
        %903 = vmatpush.bf16.msra.mxu0 %v738
        %904 = vmatpush.bf16.msra.mxu0 %v737
        %905 = vmatpush.bf16.msra.mxu0 %v736
        %906 = vmatpush.bf16.msra.mxu0 %v735
        %907 = vmatpush.bf16.msra.mxu0 %v734
        %908 = vmatpush.bf16.msra.mxu0 %v733
        %909 = vmatpush.bf16.msra.mxu0 %v732
        %910 = vmatmul.bf16.gmra.mxu0 %v411
        %v911 = vpop.f32.mrf.mxu0
        %v912 = vadd.f32 %v898, %v911
        %v913 = vpop.f32.mrf.mxu0
        %v914 = vadd.f32 %v900, %v913
        %915 = vdwg.mxu0
        %v916 = vtanh.pop %v912
        %v917 = vtanh.pop %v914
        %v918 = vpack.c.bf16 %v916, %v916
        %v919 = vpack.c.bf16 %v917, %v917
        %920 = vst [vmem:[%s228] sm:$0xf] %v918
        %921 = vst [vmem:[%s228 + $0x4] sm:$0xf] %v919
        %s922 = sand.u32 %s117, 1
        %s923 = sand.u32 %s117, 1
        %s924 = smul.addr %s923, 8
        %s925 = scalar_lea.vmem [#allocation4], %s924
        // Predicated region
        $region37: #{_encode.1} parent=31 // pred_check
          %p926 = pneg %p127
        $region38: #{_encode.1} parent=31 // pred_check_branch
          %928 = sbr.rel (%p926) target = $region40
        $region39: #{_encode.1} parent=31 // pred_region
          %s929 = smul.u32 2, %s21
          %s930 = smul.addr %s929, 2
          %s931 = sadd.s32 %s22, %s930
          %s932 = smul.addr %s931, 4
          %s933 = scalar_lea.vmem %s3, %s932
          // Predicated region
          $region41: #{_encode.1} parent=39 // pred_check
            _
          $region42: #{_encode.1} parent=39 // pred_check_branch
            %935 = sbr.rel (0) target = $region44
          $region43: #{_encode.1} parent=39 // pred_region
            // Predicated region
            $region45: #{_encode.1} parent=43 // pred_check
              _
            $region46: #{_encode.1} parent=43 // pred_check_branch
              %937 = sbr.rel target = $region48
            $region47: #{_encode.1} parent=43 // pred_region
              // Predicated region
              $region60: #{_encode.1} parent=47 // pred_check
                _
              $region61: #{_encode.1} parent=47 // pred_check_branch
                %955 = sbr.rel (0) target = $region63
              $region62: #{_encode.1} parent=47 // pred_region
                loop: start=0, step=1, limit=1
                $region64: #{_encode.1} parent=62 // loop_pre_header
                  _
                $region65: #{_encode.1} parent=62 // loop_header
                  %s957 = sphi 0, %s961
                  %p958 = scmp.ge.s32.totalorder %s957, 1
                  %s962 = sphi %s925, %s925
                  %s963 = sphi %s933, %s933
                $region66: #{_encode.1} parent=62 // loop_header_branch
                  %960 = sbr.rel (%p958) target = $region70
                $region67: #{_encode.1} parent=62 // loop_body
                  _
                $region68: #{_encode.1} parent=62 // loop_footer
                  %s961 = sadd.s32 1, %s957
                $region69: #{_encode.1} parent=62 // loop_footer_branch
                  %956 = sbr.rel target = $region65
                $region70: #{_encode.1} parent=62 // loop_exit
                  _
                %s965 = ssub.s32 16, 1
                loop: start=0, step=1, limit=1
                $region71: #{_encode.1} parent=62 // loop_pre_header
                  _
                $region72: #{_encode.1} parent=62 // loop_header
                  %s967 = sphi 0, %s971
                  %p968 = scmp.ge.s32.totalorder %s967, 1
                  %s972 = sphi %s925, %s925
                  %s973 = sphi %s933, %s933
                $region73: #{_encode.1} parent=62 // loop_header_branch
                  %970 = sbr.rel (%p968) target = $region77
                $region74: #{_encode.1} parent=62 // loop_body
                  %v974 = vld [vmem:[%s972] sm:%s965]
                  %975 = vst [vmem:[%s973] sm:%s965] %v974
                  %v976 = vld [vmem:[%s972 + $0x4] sm:%s965]
                  %977 = vst [vmem:[%s973 + $0x8] sm:%s965] %v976
                $region75: #{_encode.1} parent=62 // loop_footer
                  %s971 = sadd.s32 1, %s967
                $region76: #{_encode.1} parent=62 // loop_footer_branch
                  %966 = sbr.rel target = $region72
                $region77: #{_encode.1} parent=62 // loop_exit
                  _
              $region63: #{_encode.1} parent=47 // pred_fallthru
                _
            $region48: #{_encode.1} parent=43 // pred_fallthru
              _
            // Predicated region
            $region49: #{_encode.1} parent=43 // pred_check
              _
            $region50: #{_encode.1} parent=43 // pred_check_branch
              %939 = sbr.rel (0) target = $region52
            $region51: #{_encode.1} parent=43 // pred_region
              %s941 = ssub.s32 16, 1
              loop: start=0, step=1, limit=1
              $region53: #{_encode.1} parent=51 // loop_pre_header
                _
              $region54: #{_encode.1} parent=51 // loop_header
                %s943 = sphi 0, %s947
                %p944 = scmp.ge.s32.totalorder %s943, 1
                %s948 = sphi %s925, %s925
                %s949 = sphi %s933, %s933
              $region55: #{_encode.1} parent=51 // loop_header_branch
                %946 = sbr.rel (%p944) target = $region59
              $region56: #{_encode.1} parent=51 // loop_body
                %v950 = vld [vmem:[%s948] sm:%s941]
                %951 = vst [vmem:[%s949] sm:%s941] %v950
                %v952 = vld [vmem:[%s948 + $0x4] sm:%s941]
                %953 = vst [vmem:[%s949 + $0x8] sm:%s941] %v952
              $region57: #{_encode.1} parent=51 // loop_footer
                %s947 = sadd.s32 1, %s943
              $region58: #{_encode.1} parent=51 // loop_footer_branch
                %942 = sbr.rel target = $region54
              $region59: #{_encode.1} parent=51 // loop_exit
                _
            $region52: #{_encode.1} parent=43 // pred_fallthru
              _
          $region44: #{_encode.1} parent=39 // pred_fallthru
            _
          %978 = vnop
        $region40: #{_encode.1} parent=31 // pred_fallthru
          _
      $region32: #{_encode.1} parent=5 // pred_fallthru
        _
      %p979 = scmp.le.s32.totalorder 2, %s12
      // Predicated region
      $region78: #{_encode.1} parent=5 // pred_check
        %p980 = pneg %p979
      $region79: #{_encode.1} parent=5 // pred_check_branch
        %982 = sbr.rel (%p980) target = $region81
      $region80: #{_encode.1} parent=5 // pred_region
        %s983 = ssub.s32 %s12, 2
        // Predicated region
        $region82: #{_encode.1} parent=80 // pred_check
          %p984 = pneg %p133
        $region83: #{_encode.1} parent=80 // pred_check_branch
          %986 = sbr.rel (%p984) target = $region85
        $region84: #{_encode.1} parent=80 // pred_region
          %s987 = sand.u32 %s118, 1
          %s988 = sand.u32 %s118, 1
          %s989 = smul.addr %s988, 8
          %s990 = scalar_lea.vmem [#allocation4], %s989
        $region85: #{_encode.1} parent=80 // pred_fallthru
          _
      $region81: #{_encode.1} parent=5 // pred_fallthru
        _
    $region6: #{_encode.1} parent=1 // loop_footer
      %s16 = sadd.s32 1, %s12
    $region7: #{_encode.1} parent=1 // loop_footer_branch
      %11 = sbr.rel target = $region3
    $region8: #{_encode.1} parent=1 // loop_exit
      _
    %991 = vsyncpa [#allocation3], 1
    %s992 = scalar_lea.sflag [#allocation3], 1
    %993 = vsyncpa %s992, 1

</llo_original>
